<compile_context>
chip_gen: v6e
topology: v6e:2x2x1
jax: 0.10.0
libtpu: 0.0.40
codegen_flags: <defaults>
</compile_context>

<pallas_src>
import functools

import jax
import jax.numpy as jnp
from jax.experimental import pallas as pl
from jax.experimental.pallas import tpu as pltpu


# ---------------------------------------------------------------------------
# Pallas kernel: out_tile = fn(x_tile) * g      (fn optional, must be elementwise)
# ---------------------------------------------------------------------------
def _rezero_kernel(g_ref, x_ref, o_ref, *, fn):
    # g_ref: (1,) f32 scalar in SMEM;  x_ref / o_ref: (tm, L) VMEM tiles.
    g = g_ref[0]
    # Elementwise math kept in f32 (safe on v5e which has no bf16 VPU/EUP); this is a
    # streaming, HBM-bound kernel so the upcast is hidden behind the DMAs.
    t = x_ref[...].astype(jnp.float32)
    if fn is not None:
        t = fn(t)           # NOTE: applied to zero-padded tail elements too -> fn MUST
                            # be elementwise (padding is sliced off after the call).
    o_ref[...] = (t * g).astype(o_ref.dtype)


# ---------------------------------------------------------------------------
# Tiling helpers
# ---------------------------------------------------------------------------
_LANE_CANDIDATES = (2048, 1024, 512, 256, 128)


def _pick_lane_width(n):
    """Widest lane width (multiple of 128, <= 2048) dividing n, preferring widths that
    still leave plenty of rows for a multi-step grid.  Returns None if nothing divides."""
    divs = [L for L in _LANE_CANDIDATES if n % L == 0]
    if not divs:
        return None
    for min_rows in (64, 8, 1):
        for L in divs:                      # widest first
            if n // L >= min_rows:
                return L
    return divs[-1]


def _pick_row_tile(M, L, itemsize, *, target_tile_bytes=2 * 1024 * 1024, min_steps=4):
    """Rows per grid step: ~target_tile_bytes per buffer, sublane-aligned for the dtype,
    while keeping >= min_steps grid steps (pipeline overlap + v7x megacore sharding)
    whenever the tensor is big enough."""
    sub = max(8, 32 // max(1, itemsize))    # 8 for f32, 16 for bf16, 32 for int8
    if M <= sub:
        return M                            # full extent -> always a legal block
    rows = max(sub, (target_tile_bytes // max(1, L * itemsize)) // sub * sub)
    if M >= min_steps * sub:
        rows = min(rows, max(sub, (M // min_steps) // sub * sub))
    elif M >= 2 * sub:
        rows = min(rows, max(sub, (M // 2) // sub * sub))
    return M if rows >= M else rows         # rows is a multiple of `sub` here


# ---------------------------------------------------------------------------
# Wrapper: out = fn_elementwise(y) * g, streamed as a lane-dense (M, L) slab.
# ---------------------------------------------------------------------------
def rezero_scale(y, g, fn_elementwise=None):
    orig_shape, orig_dtype = y.shape, y.dtype
    N = y.size
    if N == 0:
        return y
    itemsize = jnp.dtype(orig_dtype).itemsize

    flat = y.reshape(-1)
    L = _pick_lane_width(N)
    if L is None:
        # Pad the flat stream up to a lane-dense length (sliced off after the call).
        pad_to = 512 if N >= 4096 else 128
        flat = jnp.pad(flat, (0, (-N) % pad_to))
        L = _pick_lane_width(flat.size)
    Np = flat.size
    M = Np // L
    y2 = flat.reshape(M, L)

    tm = _pick_row_tile(M, L, itemsize)
    grid_steps = pl.cdiv(M, tm)
    tile_bytes = tm * L * itemsize

    # If remainder handling / small tensors force small tiles, deepen the pipeline
    # instead of accepting exposed DMA issue latency.
    if tile_bytes <= 256 * 1024 and grid_steps >= 4:
        x_spec = pl.BlockSpec((tm, L), lambda i: (i, 0), pipeline_mode=pl.Buffered(3))
    else:
        x_spec = pl.BlockSpec((tm, L), lambda i: (i, 0))
    out_spec = pl.BlockSpec((tm, L), lambda i: (i, 0))

    # Derive the VMEM limit from the actual footprint; <= 32 MiB keeps headroom on
    # v7x (64 MiB physical / 32 MiB scoped default).
    vmem_limit = int(min(32 * 1024 * 1024, max(4 * 1024 * 1024, 8 * tile_bytes)))

    kernel = functools.partial(_rezero_kernel, fn=fn_elementwise)
    out = pl.pallas_call(
        kernel,
        out_shape=jax.ShapeDtypeStruct((M, L), orig_dtype),
        grid=(grid_steps,),
        in_specs=[
            pl.BlockSpec(memory_space=pltpu.MemorySpace.SMEM),   # g: (1,) f32 scalar
            x_spec,                                              # lane-dense data tiles
        ],
        out_specs=out_spec,
        compiler_params=pltpu.CompilerParams(
            dimension_semantics=("parallel",),    # megacore-shard rows on v7x
            vmem_limit_bytes=vmem_limit,
        ),
        cost_estimate=pl.CostEstimate(
            flops=Np * (2 if fn_elementwise is not None else 1),
            transcendentals=(Np if fn_elementwise is not None else 0),
            bytes_accessed=2 * Np * itemsize + 4,
        ),
    )(jnp.asarray(g, jnp.float32).reshape(1), y2)

    out_flat = out.reshape(-1)
    if Np != N:
        out_flat = out_flat[:N]
    return out_flat.reshape(orig_shape)


def rezero_forward(fn, g, x, *, fuse_elementwise=False, **kwargs):
    """ReZero.forward:  fn(x, **kwargs) * g."""
    if fuse_elementwise:
        # fn is elementwise -> fuse it into the gating kernel (single HBM round trip).
        return rezero_scale(x, g, fn_elementwise=lambda t: fn(t, **kwargs))
    # General wrapped sub-module: per perf review, do NOT launch a standalone gate
    # kernel (pure extra read+write of the tensor); let XLA fuse the scalar multiply
    # into fn's epilogue.
    # TODO(synk): a general wrapped sub-module (e.g. performer SelfAttention) has no
    # per-tile Pallas equivalent here; only the gate is expressed.
    y = fn(x, **kwargs)
    return y * jnp.asarray(g, y.dtype).reshape(())


# ---------------------------------------------------------------------------
# Demo / self-test
# ---------------------------------------------------------------------------
if __name__ == "__main__":
    key = jax.random.PRNGKey(0)
    b, n, dim = 2, 8, 64
    kx, kw = jax.random.split(key)
    x = jax.random.normal(kx, (b, n, dim), jnp.float32)

    # 1) torch init: g = zeros(1)  ->  forward(x) == 0 regardless of fn
    g0 = jnp.zeros((1,), jnp.float32)
    out0 = rezero_forward(jax.nn.gelu, g0, x, fuse_elementwise=True)
    jax.block_until_ready(out0)
    assert out0.shape == x.shape and out0.dtype == x.dtype
    assert jnp.allclose(out0, 0.0)

    # 2) non-zero gate, elementwise fn fused inside the Pallas kernel
    g1 = jnp.array([0.37], jnp.float32)
    out1 = rezero_forward(jax.nn.gelu, g1, x, fuse_elementwise=True)
    jax.block_until_ready(out1)
    ref1 = jax.nn.gelu(x) * g1[0]
    assert jnp.allclose(out1, ref1, atol=1e-5, rtol=1e-5)

    # 3) pure Pallas gate (fn = None) on a non-128-divisible shape (padding path)
    x_odd = jax.random.normal(kw, (3, 5, 7), jnp.float32)
    out2 = rezero_scale(x_odd, g1)
    jax.block_until_ready(out2)
    assert jnp.allclose(out2, x_odd * g1[0], atol=1e-6, rtol=1e-6)

    # 4) bf16 input through the gate kernel
    xb = x.astype(jnp.bfloat16)
    out3 = rezero_scale(xb, g1)
    jax.block_until_ready(out3)
    ref3 = (xb.astype(jnp.float32) * g1[0]).astype(jnp.bfloat16)
    assert jnp.allclose(out3.astype(jnp.float32), ref3.astype(jnp.float32),
                        atol=1e-2, rtol=1e-2)

    # 5) general wrapped-module path (fn as plain JAX; gate fused by XLA per review)
    w = jax.random.normal(kw, (dim, dim), jnp.float32) / (float(dim) ** 0.5)
    ff = lambda t: jnp.tanh(t @ w)
    out4 = rezero_forward(ff, g1, x)
    jax.block_until_ready(out4)
    ref4 = ff(x) * g1[0]
    assert jnp.allclose(out4, ref4, atol=1e-5, rtol=1e-5)

    print("KERNEL_OK")
</pallas_src>

<mosaic_0001>
module attributes {stable_mosaic.version = 11 : i64} {
  func.func @_rezero_kernel(%arg0: i32, %arg1: memref<1xf32, #tpu.memory_space<smem>>, %arg2: memref<8x128xf32, #tpu.memory_space<vmem>>, %arg3: memref<8x128xf32, #tpu.memory_space<vmem>>) attributes {dimension_semantics = [#tpu.dimension_semantics<parallel>], iteration_bounds = array<i64: 1>, scalar_prefetch = 0 : i64, scratch_operands = 0 : i64, tpu.core_type = #tpu.core_type<tc>, window_params = [{transform_indices = @transform_0, window_bounds = array<i64: 1>}, {transform_indices = @transform_1, window_bounds = array<i64: 8, 128>}, {transform_indices = @transform_2, window_bounds = array<i64: 8, 128>}]} {
    %c0 = arith.constant 0 : index
    %0 = memref.load %arg1[%c0] : memref<1xf32, #tpu.memory_space<smem>>
    %c0_0 = arith.constant 0 : index
    %c0_1 = arith.constant 0 : index
    %1 = vector.load %arg2[%c0_0, %c0_1] : memref<8x128xf32, #tpu.memory_space<vmem>>, vector<8x128xf32>
    %2 = arith.mulf %1, %1 : vector<8x128xf32>
    %3 = arith.mulf %1, %2 : vector<8x128xf32>
    %cst = arith.constant 4.471500e-02 : f32
    %4 = vector.broadcast %cst : f32 to vector<8x128xf32>
    %5 = arith.mulf %4, %3 : vector<8x128xf32>
    %6 = arith.addf %1, %5 : vector<8x128xf32>
    %cst_2 = arith.constant 0.797884583 : f32
    %7 = vector.broadcast %cst_2 : f32 to vector<8x128xf32>
    %8 = arith.mulf %7, %6 : vector<8x128xf32>
    %9 = math.tanh %8 : vector<8x128xf32>
    %cst_3 = arith.constant 1.000000e+00 : f32
    %10 = vector.broadcast %cst_3 : f32 to vector<8x128xf32>
    %11 = arith.addf %10, %9 : vector<8x128xf32>
    %cst_4 = arith.constant 5.000000e-01 : f32
    %12 = vector.broadcast %cst_4 : f32 to vector<8x128xf32>
    %13 = arith.mulf %12, %11 : vector<8x128xf32>
    %14 = arith.mulf %1, %13 : vector<8x128xf32>
    %15 = vector.broadcast %0 : f32 to vector<8x128xf32>
    %16 = arith.mulf %14, %15 : vector<8x128xf32>
    %c0_5 = arith.constant 0 : index
    %c0_6 = arith.constant 0 : index
    %17 = vector.load %arg3[%c0_5, %c0_6] : memref<8x128xf32, #tpu.memory_space<vmem>>, vector<8x128xf32>
    tpu.vector_store %arg3[%c0_5, %c0_6], %16 {strides = array<i32>} : memref<8x128xf32, #tpu.memory_space<vmem>>, vector<8x128xf32>,
    return
  }
  func.func @transform_0(%arg0: i32) -> i32 {
    %c0_i32 = arith.constant 0 : i32
    %c0_i32_0 = arith.constant 0 : i32
    return %c0_i32 : i32
  }
  func.func @transform_1(%arg0: i32) -> (i32, i32) {
    %c0_i32 = arith.constant 0 : i32
    %c0_i32_0 = arith.constant 0 : i32
    return %arg0, %c0_i32 : i32, i32
  }
  func.func @transform_2(%arg0: i32) -> (i32, i32) {
    %c0_i32 = arith.constant 0 : i32
    %c0_i32_0 = arith.constant 0 : i32
    return %arg0, %c0_i32 : i32, i32
  }
}

</mosaic_0001>

<llo_original>
// kernel: tpu_custom_call.1
$region0: #{tpu_custom_call.1}
  #allocation0 [shape = 'u32[]', space=smem, size = 0x4, offset = 0x4, fixed_abs, tag = 'smem constant byte address 0x4 - core index']
  #allocation1 [shape = 'u32[144,128]{1,0:T(1,128)}', space=vmem, size = 0x12000, scoped, tag = 'internal scratch']
  #allocation2 [shape = 'f32[1]{0:T(128)S(6)}', space=smem, size = 0x200, scoped, tag = 'scoped memory for tpu_custom_call.1']
  %s0 = inlined_call_operand.<no memory space> [shape: f32[1], index: 0, kind: input, shape index: {}]
  %s1 = inlined_call_operand.hbm [shape: f32[8,128], index: 1, kind: input, shape index: {}]
  %s2 = inlined_call_operand.hbm [shape: f32[8,128], index: 2, kind: output, shape index: {}]
  %s3 = sld [smem:[#allocation0]]
  $region22: #{tpu_custom_call.1} parent=0
    _
  %s5 = ssub.s32 1, %s3
  %s6 = scalar_select 0, %s5, %s3
  %7 = sst [smem:[#allocation2]] %s0
  $region1: #{tpu_custom_call.1} parent=0
    #allocation3 [shape = 'u8[4096]{0}', space=vmem, size = 0x1000, scoped, tag = 'input window, operand 1, single buffered']
    #allocation4 [shape = 's32[1]{0}', space=sflag, size = 0x4, scoped, tag = 'scoped memory for tpu_custom_call.1']
    #allocation5 [shape = 's32[1]{0}', space=sflag, size = 0x4, scoped, tag = 'scoped memory for tpu_custom_call.1']
    #allocation6 [shape = 'u8[4096]{0}', space=vmem, size = 0x1000, scoped, tag = 'output window, operand 0, single buffered']
    %8 = vsyncpa [#allocation4], 0
    %9 = vsyncpa [#allocation5], 0
    // Predicated region
    $region2: #{tpu_custom_call.1} parent=1 // pred_check
      _
    $region3: #{tpu_custom_call.1} parent=1 // pred_check_branch
      %11 = sbr.rel (0) target = $region5
    $region4: #{tpu_custom_call.1} parent=1 // pred_region
      _
    $region5: #{tpu_custom_call.1} parent=1 // pred_fallthru
      _
    // Predicated region
    $region6: #{tpu_custom_call.1} parent=1 // pred_check
      _
    $region7: #{tpu_custom_call.1} parent=1 // pred_check_branch
      %13 = sbr.rel (0) target = $region9
    $region8: #{tpu_custom_call.1} parent=1 // pred_region
      %s15 = ssub.s32 128, 128
      %16 = vsyncadd [#allocation4], %s15
      %s18 = sshll.u32 [#allocation3], 4
      %s19 = int_to_ptr.vmem [resolvable:$true] %s18
      %21 = dma.hbm_to_vmem [thread:$0]  %s1, 128, %s19, [#allocation4]
    $region9: #{tpu_custom_call.1} parent=1 // pred_fallthru
      _
    // Predicated region
    $region10: #{tpu_custom_call.1} parent=1 // pred_check
      _
    $region11: #{tpu_custom_call.1} parent=1 // pred_check_branch
      %23 = sbr.rel (0) target = $region13
    $region12: #{tpu_custom_call.1} parent=1 // pred_region
      %24 = dma.done [#allocation4], 128
    $region13: #{tpu_custom_call.1} parent=1 // pred_fallthru
      _
    %s25 = sld [smem:[#allocation2]]
    %v26 = vld [vmem:[#allocation3] sm:$0xff]
    %v27 = vmul.f32 %v26, %v26
    %v28 = vmul.f32 %v26, %v27
    %v29 = vmul.f32 %v28, 0.044715
    %v30 = vadd.f32 %v26, %v29
    %v31 = vmul.f32 %v30, 0.7978846
    %v32 = vtanh.pop %v31
    %v33 = vadd.f32 %v32, 1.0
    %v34 = vmul.f32 %v33, 0.5
    %v35 = vmul.f32 %v26, %v34
    %v36 = vstv %s25
    %v37 = vmul.f32 %v35, %v36
    %38 = vst [vmem:[#allocation6] sm:$0xff] %v37
    // Predicated region
    $region14: #{tpu_custom_call.1} parent=1 // pred_check
      _
    $region15: #{tpu_custom_call.1} parent=1 // pred_check_branch
      %40 = sbr.rel (0) target = $region17
    $region16: #{tpu_custom_call.1} parent=1 // pred_region
      %s42 = ssub.s32 128, 128
      %43 = vsyncadd [#allocation5], %s42
      %s45 = sshll.u32 [#allocation6], 4
      %s46 = int_to_ptr.vmem [resolvable:$true] %s45
      %48 = dma.vmem_to_hbm [thread:$0]  %s46, 128, %s2, [#allocation5]
    $region17: #{tpu_custom_call.1} parent=1 // pred_fallthru
      _
    // Predicated region
    $region18: #{tpu_custom_call.1} parent=1 // pred_check
      _
    $region19: #{tpu_custom_call.1} parent=1 // pred_check_branch
      %50 = sbr.rel (0) target = $region21
    $region20: #{tpu_custom_call.1} parent=1 // pred_region
      %51 = dma.done [#allocation5], 128
    $region21: #{tpu_custom_call.1} parent=1 // pred_fallthru
      _
    %52 = vsyncpa [#allocation4], 1
    %53 = vsyncpa [#allocation5], 1

</llo_original>
